<compile_context>
chip_gen: v7x
topology: tpu7x:2x2x1
jax: 0.10.0
libtpu: 0.0.40
codegen_flags: <defaults>
</compile_context>

<pallas_src>
import functools

import jax
import jax.numpy as jnp
from jax.experimental import pallas as pl
from jax.experimental.pallas import tpu as pltpu


def _round_up(x, m):
    return (x + m - 1) // m * m


def _spectral_block_kernel(x_ref, w_ref, o_ref):
    """One block of TM Fourier modes.

    x_ref: (TM, Bp, Kp)  bf16  — per mode: [Re(x_ft) | Im(x_ft)] along lanes
    w_ref: (TM, Kp, Np)  bf16  — per mode 2x2 real-block complex weights
    o_ref: (TM, Bp, Np)  f32   — per mode: [Re(out_ft) | Im(out_ft)]
    """
    # One batched MXU matmul for the whole mode block, f32 accumulation.
    o_ref[...] = jax.lax.dot_general(
        x_ref[...], w_ref[...],
        dimension_numbers=(((2,), (1,)), ((0,), (0,))),
        preferred_element_type=jnp.float32)


def _compl_mul1d_pallas(x_ft_modes, wr, wi):
    """einsum('bix,iox->box') over complex inputs via one fused real matmul/mode.

    x_ft_modes: (B, Cin, M) complex64
    wr, wi    : (Cin, Cout, M) float32 (real / imag parts of complex weights)
    returns   : (B, Cout, M) complex64
    """
    B, Cin, M = x_ft_modes.shape
    Cout = wr.shape[1]

    # Padded / tiled sizes: lane-dense last dims (multiples of 128), sublane-
    # aligned batch (multiple of 8), mode axis blocked by TM per grid step.
    Bp = _round_up(B, 8)
    Kp = _round_up(2 * Cin, 128)
    Np = _round_up(2 * Cout, 128)
    Mp = _round_up(M, 8)
    # Largest of {32, 16, 8} that divides Mp: big blocks amortize per-step
    # overhead without padding extra (wasted) modes.
    if Mp % 32 == 0:
        tm = 32
    elif Mp % 16 == 0:
        tm = 16
    else:
        tm = 8
    grid = (Mp // tm,)

    # x: real/imag split + mode-major transpose in one fused XLA pass.
    x_cat = jnp.concatenate(
        [jnp.real(x_ft_modes), jnp.imag(x_ft_modes)], axis=1)      # (B, 2Cin, M)
    x_mk = jnp.transpose(x_cat, (2, 0, 1))                         # (M, B, 2Cin)
    x_mk = jnp.pad(x_mk, ((0, Mp - M), (0, Bp - B), (0, Kp - 2 * Cin)))
    x_mk = x_mk.astype(jnp.bfloat16)

    # weights: 2x2 real-block embedding [[wr, wi], [-wi, wr]] per mode.
    w_blk = jnp.concatenate(
        [jnp.concatenate([wr, wi], axis=1),
         jnp.concatenate([-wi, wr], axis=1)], axis=0)              # (2Cin, 2Cout, M)
    w_blk = jnp.transpose(w_blk, (2, 0, 1))                        # (M, 2Cin, 2Cout)
    w_blk = jnp.pad(w_blk, ((0, Mp - M), (0, Kp - 2 * Cin), (0, Np - 2 * Cout)))
    w_blk = w_blk.astype(jnp.bfloat16)

    cost = pl.CostEstimate(
        flops=2 * Mp * Bp * Kp * Np,
        transcendentals=0,
        bytes_accessed=x_mk.size * 2 + w_blk.size * 2 + Mp * Bp * Np * 4,
    )

    out = pl.pallas_call(
        _spectral_block_kernel,
        out_shape=jax.ShapeDtypeStruct((Mp, Bp, Np), jnp.float32),
        grid=grid,
        in_specs=[
            pl.BlockSpec((tm, Bp, Kp), lambda m: (m, 0, 0)),   # mode block of x
            pl.BlockSpec((tm, Kp, Np), lambda m: (m, 0, 0)),   # mode block of w
        ],
        out_specs=pl.BlockSpec((tm, Bp, Np), lambda m: (m, 0, 0)),
        compiler_params=pltpu.CompilerParams(
            dimension_semantics=("parallel",)),
        cost_estimate=cost,
    )(x_mk, w_blk)

    out = out[:M, :B, :]                                           # (M, B, Np)
    out_c = jax.lax.complex(out[..., :Cout], out[..., Cout:2 * Cout])
    return jnp.transpose(out_c, (1, 2, 0))                         # (B, Cout, M)


def spectral_conv1d(x, wr, wi, modes):
    """Forward pass of SpectralConv1d.

    x : (B, Cin, L) float32      (PyTorch NCL layout)
    wr, wi : (Cin, Cout, modes) float32  (real/imag parts of complex weights)
    returns: (B, Cout, L) float32
    """
    B, Cin, L = x.shape
    n_freq = L // 2 + 1

    # TODO(synk): rfft/irfft have no Pallas TPU primitive; kept in plain JAX.
    x_ft = jnp.fft.rfft(x, axis=-1)                           # (B, Cin, n_freq)
    out_m = _compl_mul1d_pallas(x_ft[:, :, :modes], wr, wi)   # (B, Cout, modes)

    # zero-fill the high frequencies (out_ft[:, :, modes:] = 0)
    out_ft = jnp.pad(out_m, ((0, 0), (0, 0), (0, n_freq - modes)))
    return jnp.fft.irfft(out_ft, n=L, axis=-1).astype(jnp.float32)


if __name__ == "__main__":
    B, Cin, Cout, L, modes = 2, 4, 4, 16, 5

    key = jax.random.PRNGKey(0)
    k_x, k_wr, k_wi = jax.random.split(key, 3)

    x = jax.random.normal(k_x, (B, Cin, L), dtype=jnp.float32)

    # Matches nn.Parameter(scale * torch.rand(Cin, Cout, modes, dtype=cfloat)):
    # real and imag parts each uniform in [0,1) scaled by 1/(Cin*Cout).
    scale = 1.0 / (Cin * Cout)
    wr = scale * jax.random.uniform(k_wr, (Cin, Cout, modes), dtype=jnp.float32)
    wi = scale * jax.random.uniform(k_wi, (Cin, Cout, modes), dtype=jnp.float32)

    fwd = jax.jit(functools.partial(spectral_conv1d, modes=modes))
    out = fwd(x, wr, wi)
    out = jax.block_until_ready(out)

    # Pure-JAX reference for a correctness sanity check.
    x_ft = jnp.fft.rfft(x, axis=-1)
    w = jax.lax.complex(wr, wi)
    ref_ft = jnp.zeros((B, Cout, L // 2 + 1), dtype=jnp.complex64)
    ref_ft = ref_ft.at[:, :, :modes].set(
        jnp.einsum("bix,iox->box", x_ft[:, :, :modes], w))
    ref = jnp.fft.irfft(ref_ft, n=L, axis=-1)

    assert out.shape == (B, Cout, L), out.shape
    # bf16 matmul operands with f32 accumulation -> loosened tolerance.
    max_err = float(jnp.max(jnp.abs(out - ref)))
    assert jnp.allclose(out, ref, atol=1e-2, rtol=1e-2), max_err
    print("KERNEL_OK")
</pallas_src>

<mosaic_0001>
module attributes {stable_mosaic.version = 11 : i64} {
  func.func @_spectral_block_kernel(%arg0: i32, %arg1: memref<8x8x128xbf16, #tpu.memory_space<vmem>>, %arg2: memref<8x128x128xbf16, #tpu.memory_space<vmem>>, %arg3: memref<8x8x128xf32, #tpu.memory_space<vmem>>) attributes {dimension_semantics = [#tpu.dimension_semantics<parallel>], iteration_bounds = array<i64: 1>, scalar_prefetch = 0 : i64, scratch_operands = 0 : i64, tpu.core_type = #tpu.core_type<tc>, window_params = [{transform_indices = @transform_0, window_bounds = array<i64: 8, 8, 128>}, {transform_indices = @transform_1, window_bounds = array<i64: 8, 128, 128>}, {transform_indices = @transform_2, window_bounds = array<i64: 8, 8, 128>}]} {
    %c0 = arith.constant 0 : index
    %c0_0 = arith.constant 0 : index
    %c0_1 = arith.constant 0 : index
    %0 = vector.load %arg1[%c0, %c0_0, %c0_1] : memref<8x8x128xbf16, #tpu.memory_space<vmem>>, vector<8x8x128xbf16>
    %c0_2 = arith.constant 0 : index
    %c0_3 = arith.constant 0 : index
    %c0_4 = arith.constant 0 : index
    %1 = vector.load %arg2[%c0_2, %c0_3, %c0_4] : memref<8x128x128xbf16, #tpu.memory_space<vmem>>, vector<8x128x128xbf16>
    %cst = arith.constant dense<0.000000e+00> : vector<8x8x128xf32>
    %2 = tpu.matmul %0, %1, %cst {dimension_numbers = #tpu.dot_dimension_numbers<[2], [1], [1], [2], [0, 0, 0, 1, 1, 2], [0], [0]>} : vector<8x8x128xbf16>, vector<8x128x128xbf16>, vector<8x8x128xf32> -> vector<8x8x128xf32>
    %c0_5 = arith.constant 0 : index
    %c0_6 = arith.constant 0 : index
    %c0_7 = arith.constant 0 : index
    %3 = vector.load %arg3[%c0_5, %c0_6, %c0_7] : memref<8x8x128xf32, #tpu.memory_space<vmem>>, vector<8x8x128xf32>
    tpu.vector_store %arg3[%c0_5, %c0_6, %c0_7], %2 {strides = array<i32>} : memref<8x8x128xf32, #tpu.memory_space<vmem>>, vector<8x8x128xf32>,
    return
  }
  func.func @transform_0(%arg0: i32) -> (i32, i32, i32) {
    %c0_i32 = arith.constant 0 : i32
    %c0_i32_0 = arith.constant 0 : i32
    %c0_i32_1 = arith.constant 0 : i32
    return %arg0, %c0_i32, %c0_i32_0 : i32, i32, i32
  }
  func.func @transform_1(%arg0: i32) -> (i32, i32, i32) {
    %c0_i32 = arith.constant 0 : i32
    %c0_i32_0 = arith.constant 0 : i32
    %c0_i32_1 = arith.constant 0 : i32
    return %arg0, %c0_i32, %c0_i32_0 : i32, i32, i32
  }
  func.func @transform_2(%arg0: i32) -> (i32, i32, i32) {
    %c0_i32 = arith.constant 0 : i32
    %c0_i32_0 = arith.constant 0 : i32
    %c0_i32_1 = arith.constant 0 : i32
    return %arg0, %c0_i32, %c0_i32_0 : i32, i32, i32
  }
}

</mosaic_0001>

<llo_original>
// kernel: neg.1
$region0: #{neg.1}
  #allocation0 [shape = 's32[1]{0}', space=sflag, size = 0x4, scoped, tag = 'scoped memory for neg.1']
  %s0 = inlined_call_operand.vmem [shape: f32[4,4,5], index: 0, kind: input, shape index: {}]
  %s1 = inlined_call_operand.vmem [shape: bf16[4,4,5], index: 1, kind: output, shape index: {}]
  %v2 = vld [vmem:[%s0] sm:$0xf]
  %3 = xla_tuple %v2
  %4 = xla_tuple %3
  %v5 = vxor.u32 %v2, 2147483648
  %6 = xla_tuple %v5
  %v7 = vpack.c.bf16 0.0, %v5
  %8 = vst [vmem:[%s1] sm:$0x3] %v7
  %s9 = scalar_lea.vmem %s0, 4
  %v10 = vld [vmem:[%s9] sm:$0xf]
  %11 = xla_tuple %v10
  %12 = xla_tuple %11
  %v13 = vxor.u32 %v10, 2147483648
  %14 = xla_tuple %v13
  %s15 = scalar_lea.vmem %s1, 2
  %v16 = vpack.c.bf16 0.0, %v13
  %17 = vst [vmem:[%s15] sm:$0x3] %v16
  %s18 = scalar_lea.vmem %s0, 8
  %v19 = vld [vmem:[%s18] sm:$0xf]
  %20 = xla_tuple %v19
  %21 = xla_tuple %20
  %v22 = vxor.u32 %v19, 2147483648
  %23 = xla_tuple %v22
  %s24 = scalar_lea.vmem %s1, 4
  %v25 = vpack.c.bf16 0.0, %v22
  %26 = vst [vmem:[%s24] sm:$0x3] %v25
  %s27 = scalar_lea.vmem %s0, 12
  %v28 = vld [vmem:[%s27] sm:$0xf]
  %29 = xla_tuple %v28
  %30 = xla_tuple %29
  %v31 = vxor.u32 %v28, 2147483648
  %32 = xla_tuple %v31
  %s33 = scalar_lea.vmem %s1, 6
  %v34 = vpack.c.bf16 0.0, %v31
  %35 = vst [vmem:[%s33] sm:$0x3] %v34

// kernel: reverse.1
$region0: #{reverse.1}
  #allocation0 [shape = 's32[1]{0}', space=sflag, size = 0x4, scoped, tag = 'scoped memory for reverse.1']
  %s0 = inlined_call_operand.vmem [shape: f32[2,4,7], index: 0, kind: input, shape index: {}]
  %s1 = inlined_call_operand.vmem [shape: f32[2,4,7], index: 1, kind: output, shape index: {}]
  %s2 = scalar_lea.vmem %s0, 12
  %v3 = vld [vmem:[%s2] sm:$0x3]
  %4 = vst [vmem:[%s1] sm:$0x3] %v3
  %s5 = scalar_lea.vmem %s0, 10
  %v6 = vld [vmem:[%s5] sm:$0x3]
  %s7 = scalar_lea.vmem %s1, 2
  %8 = vst [vmem:[%s7] sm:$0x3] %v6
  %s9 = scalar_lea.vmem %s0, 8
  %v10 = vld [vmem:[%s9] sm:$0x3]
  %s11 = scalar_lea.vmem %s1, 4
  %12 = vst [vmem:[%s11] sm:$0x3] %v10
  %s13 = scalar_lea.vmem %s0, 6
  %v14 = vld [vmem:[%s13] sm:$0x3]
  %s15 = scalar_lea.vmem %s1, 6
  %16 = vst [vmem:[%s15] sm:$0x3] %v14
  %s17 = scalar_lea.vmem %s0, 4
  %v18 = vld [vmem:[%s17] sm:$0x3]
  %s19 = scalar_lea.vmem %s1, 8
  %20 = vst [vmem:[%s19] sm:$0x3] %v18
  %s21 = scalar_lea.vmem %s0, 2
  %v22 = vld [vmem:[%s21] sm:$0x3]
  %s23 = scalar_lea.vmem %s1, 10
  %24 = vst [vmem:[%s23] sm:$0x3] %v22
  %v25 = vld [vmem:[%s0] sm:$0x3]
  %s26 = scalar_lea.vmem %s1, 12
  %27 = vst [vmem:[%s26] sm:$0x3] %v25

// kernel: spectral_conv1d.1
$region0: #{spectral_conv1d.1}
  #allocation0 [shape = 'u32[]', space=smem, size = 0x4, offset = 0x4, fixed_abs, tag = 'smem constant byte address 0x4 - core index']
  #allocation1 [shape = 'u32[144,128]{1,0:T(1,128)}', space=vmem, size = 0x12000, scoped, tag = 'internal scratch']
  %s0 = inlined_call_operand.vmem [shape: bf16[8,8,128], index: 0, kind: input, shape index: {}]
  %s1 = inlined_call_operand.vmem [shape: bf16[8,128,128], index: 1, kind: input, shape index: {}]
  %s2 = inlined_call_operand.vmem [shape: f32[8,8,128], index: 2, kind: output, shape index: {}]
  %s3 = sld [smem:[#allocation0]]
  $region18: #{spectral_conv1d.1} parent=0
    _
  %s5 = ssub.s32 1, %s3
  %s6 = scalar_select 0, %s5, %s3
  // Predicated region
  $region2: #{spectral_conv1d.1} parent=0 // pred_check
    _
  $region3: #{spectral_conv1d.1} parent=0 // pred_check_branch
    %8 = sbr.rel (0) target = $region5
  $region4: #{spectral_conv1d.1} parent=0 // pred_region
    _
  $region5: #{spectral_conv1d.1} parent=0 // pred_fallthru
    _
  // Predicated region
  $region6: #{spectral_conv1d.1} parent=0 // pred_check
    _
  $region7: #{spectral_conv1d.1} parent=0 // pred_check_branch
    %10 = sbr.rel (0) target = $region9
  $region8: #{spectral_conv1d.1} parent=0 // pred_region
    _
  $region9: #{spectral_conv1d.1} parent=0 // pred_fallthru
    _
  %v12 = vld [vmem:[%s0] sm:$0xf]
  %v13 = vld [vmem:[%s0 + $0x4] sm:$0xf]
  %v14 = vld [vmem:[%s0 + $0x8] sm:$0xf]
  %v15 = vld [vmem:[%s0 + $0xc] sm:$0xf]
  %v16 = vld [vmem:[%s0 + $0x10] sm:$0xf]
  %v17 = vld [vmem:[%s0 + $0x14] sm:$0xf]
  %v18 = vld [vmem:[%s0 + $0x18] sm:$0xf]
  %v19 = vld [vmem:[%s0 + $0x1c] sm:$0xf]
  %v20 = vld [vmem:[%s1] sm:$0xf]
  %v21 = vld [vmem:[%s1 + $0x4] sm:$0xf]
  %v22 = vld [vmem:[%s1 + $0x8] sm:$0xf]
  %v23 = vld [vmem:[%s1 + $0xc] sm:$0xf]
  %v24 = vld [vmem:[%s1 + $0x10] sm:$0xf]
  %v25 = vld [vmem:[%s1 + $0x14] sm:$0xf]
  %v26 = vld [vmem:[%s1 + $0x18] sm:$0xf]
  %v27 = vld [vmem:[%s1 + $0x1c] sm:$0xf]
  %v28 = vld [vmem:[%s1 + $0x20] sm:$0xf]
  %v29 = vld [vmem:[%s1 + $0x24] sm:$0xf]
  %v30 = vld [vmem:[%s1 + $0x28] sm:$0xf]
  %v31 = vld [vmem:[%s1 + $0x2c] sm:$0xf]
  %v32 = vld [vmem:[%s1 + $0x30] sm:$0xf]
  %v33 = vld [vmem:[%s1 + $0x34] sm:$0xf]
  %v34 = vld [vmem:[%s1 + $0x38] sm:$0xf]
  %v35 = vld [vmem:[%s1 + $0x3c] sm:$0xf]
  %v36 = vld [vmem:[%s1 + $0x40] sm:$0xf]
  %v37 = vld [vmem:[%s1 + $0x44] sm:$0xf]
  %v38 = vld [vmem:[%s1 + $0x48] sm:$0xf]
  %v39 = vld [vmem:[%s1 + $0x4c] sm:$0xf]
  %v40 = vld [vmem:[%s1 + $0x50] sm:$0xf]
  %v41 = vld [vmem:[%s1 + $0x54] sm:$0xf]
  %v42 = vld [vmem:[%s1 + $0x58] sm:$0xf]
  %v43 = vld [vmem:[%s1 + $0x5c] sm:$0xf]
  %v44 = vld [vmem:[%s1 + $0x60] sm:$0xf]
  %v45 = vld [vmem:[%s1 + $0x64] sm:$0xf]
  %v46 = vld [vmem:[%s1 + $0x68] sm:$0xf]
  %v47 = vld [vmem:[%s1 + $0x6c] sm:$0xf]
  %v48 = vld [vmem:[%s1 + $0x70] sm:$0xf]
  %v49 = vld [vmem:[%s1 + $0x74] sm:$0xf]
  %v50 = vld [vmem:[%s1 + $0x78] sm:$0xf]
  %v51 = vld [vmem:[%s1 + $0x7c] sm:$0xf]
  %v52 = vld [vmem:[%s1 + $0x80] sm:$0xf]
  %v53 = vld [vmem:[%s1 + $0x84] sm:$0xf]
  %v54 = vld [vmem:[%s1 + $0x88] sm:$0xf]
  %v55 = vld [vmem:[%s1 + $0x8c] sm:$0xf]
  %v56 = vld [vmem:[%s1 + $0x90] sm:$0xf]
  %v57 = vld [vmem:[%s1 + $0x94] sm:$0xf]
  %v58 = vld [vmem:[%s1 + $0x98] sm:$0xf]
  %v59 = vld [vmem:[%s1 + $0x9c] sm:$0xf]
  %v60 = vld [vmem:[%s1 + $0xa0] sm:$0xf]
  %v61 = vld [vmem:[%s1 + $0xa4] sm:$0xf]
  %v62 = vld [vmem:[%s1 + $0xa8] sm:$0xf]
  %v63 = vld [vmem:[%s1 + $0xac] sm:$0xf]
  %v64 = vld [vmem:[%s1 + $0xb0] sm:$0xf]
  %v65 = vld [vmem:[%s1 + $0xb4] sm:$0xf]
  %v66 = vld [vmem:[%s1 + $0xb8] sm:$0xf]
  %v67 = vld [vmem:[%s1 + $0xbc] sm:$0xf]
  %v68 = vld [vmem:[%s1 + $0xc0] sm:$0xf]
  %v69 = vld [vmem:[%s1 + $0xc4] sm:$0xf]
  %v70 = vld [vmem:[%s1 + $0xc8] sm:$0xf]
  %v71 = vld [vmem:[%s1 + $0xcc] sm:$0xf]
  %v72 = vld [vmem:[%s1 + $0xd0] sm:$0xf]
  %v73 = vld [vmem:[%s1 + $0xd4] sm:$0xf]
  %v74 = vld [vmem:[%s1 + $0xd8] sm:$0xf]
  %v75 = vld [vmem:[%s1 + $0xdc] sm:$0xf]
  %v76 = vld [vmem:[%s1 + $0xe0] sm:$0xf]
  %v77 = vld [vmem:[%s1 + $0xe4] sm:$0xf]
  %v78 = vld [vmem:[%s1 + $0xe8] sm:$0xf]
  %v79 = vld [vmem:[%s1 + $0xec] sm:$0xf]
  %v80 = vld [vmem:[%s1 + $0xf0] sm:$0xf]
  %v81 = vld [vmem:[%s1 + $0xf4] sm:$0xf]
  %v82 = vld [vmem:[%s1 + $0xf8] sm:$0xf]
  %v83 = vld [vmem:[%s1 + $0xfc] sm:$0xf]
  %v84 = vld [vmem:[%s1 + $0x100] sm:$0xf]
  %v85 = vld [vmem:[%s1 + $0x104] sm:$0xf]
  %v86 = vld [vmem:[%s1 + $0x108] sm:$0xf]
  %v87 = vld [vmem:[%s1 + $0x10c] sm:$0xf]
  %v88 = vld [vmem:[%s1 + $0x110] sm:$0xf]
  %v89 = vld [vmem:[%s1 + $0x114] sm:$0xf]
  %v90 = vld [vmem:[%s1 + $0x118] sm:$0xf]
  %v91 = vld [vmem:[%s1 + $0x11c] sm:$0xf]
  %v92 = vld [vmem:[%s1 + $0x120] sm:$0xf]
  %v93 = vld [vmem:[%s1 + $0x124] sm:$0xf]
  %v94 = vld [vmem:[%s1 + $0x128] sm:$0xf]
  %v95 = vld [vmem:[%s1 + $0x12c] sm:$0xf]
  %v96 = vld [vmem:[%s1 + $0x130] sm:$0xf]
  %v97 = vld [vmem:[%s1 + $0x134] sm:$0xf]
  %v98 = vld [vmem:[%s1 + $0x138] sm:$0xf]
  %v99 = vld [vmem:[%s1 + $0x13c] sm:$0xf]
  %v100 = vld [vmem:[%s1 + $0x140] sm:$0xf]
  %v101 = vld [vmem:[%s1 + $0x144] sm:$0xf]
  %v102 = vld [vmem:[%s1 + $0x148] sm:$0xf]
  %v103 = vld [vmem:[%s1 + $0x14c] sm:$0xf]
  %v104 = vld [vmem:[%s1 + $0x150] sm:$0xf]
  %v105 = vld [vmem:[%s1 + $0x154] sm:$0xf]
  %v106 = vld [vmem:[%s1 + $0x158] sm:$0xf]
  %v107 = vld [vmem:[%s1 + $0x15c] sm:$0xf]
  %v108 = vld [vmem:[%s1 + $0x160] sm:$0xf]
  %v109 = vld [vmem:[%s1 + $0x164] sm:$0xf]
  %v110 = vld [vmem:[%s1 + $0x168] sm:$0xf]
  %v111 = vld [vmem:[%s1 + $0x16c] sm:$0xf]
  %v112 = vld [vmem:[%s1 + $0x170] sm:$0xf]
  %v113 = vld [vmem:[%s1 + $0x174] sm:$0xf]
  %v114 = vld [vmem:[%s1 + $0x178] sm:$0xf]
  %v115 = vld [vmem:[%s1 + $0x17c] sm:$0xf]
  %v116 = vld [vmem:[%s1 + $0x180] sm:$0xf]
  %v117 = vld [vmem:[%s1 + $0x184] sm:$0xf]
  %v118 = vld [vmem:[%s1 + $0x188] sm:$0xf]
  %v119 = vld [vmem:[%s1 + $0x18c] sm:$0xf]
  %v120 = vld [vmem:[%s1 + $0x190] sm:$0xf]
  %v121 = vld [vmem:[%s1 + $0x194] sm:$0xf]
  %v122 = vld [vmem:[%s1 + $0x198] sm:$0xf]
  %v123 = vld [vmem:[%s1 + $0x19c] sm:$0xf]
  %v124 = vld [vmem:[%s1 + $0x1a0] sm:$0xf]
  %v125 = vld [vmem:[%s1 + $0x1a4] sm:$0xf]
  %v126 = vld [vmem:[%s1 + $0x1a8] sm:$0xf]
  %v127 = vld [vmem:[%s1 + $0x1ac] sm:$0xf]
  %v128 = vld [vmem:[%s1 + $0x1b0] sm:$0xf]
  %v129 = vld [vmem:[%s1 + $0x1b4] sm:$0xf]
  %v130 = vld [vmem:[%s1 + $0x1b8] sm:$0xf]
  %v131 = vld [vmem:[%s1 + $0x1bc] sm:$0xf]
  %v132 = vld [vmem:[%s1 + $0x1c0] sm:$0xf]
  %v133 = vld [vmem:[%s1 + $0x1c4] sm:$0xf]
  %v134 = vld [vmem:[%s1 + $0x1c8] sm:$0xf]
  %v135 = vld [vmem:[%s1 + $0x1cc] sm:$0xf]
  %v136 = vld [vmem:[%s1 + $0x1d0] sm:$0xf]
  %v137 = vld [vmem:[%s1 + $0x1d4] sm:$0xf]
  %v138 = vld [vmem:[%s1 + $0x1d8] sm:$0xf]
  %v139 = vld [vmem:[%s1 + $0x1dc] sm:$0xf]
  %v140 = vld [vmem:[%s1 + $0x1e0] sm:$0xf]
  %v141 = vld [vmem:[%s1 + $0x1e4] sm:$0xf]
  %v142 = vld [vmem:[%s1 + $0x1e8] sm:$0xf]
  %v143 = vld [vmem:[%s1 + $0x1ec] sm:$0xf]
  %v144 = vld [vmem:[%s1 + $0x1f0] sm:$0xf]
  %v145 = vld [vmem:[%s1 + $0x1f4] sm:$0xf]
  %v146 = vld [vmem:[%s1 + $0x1f8] sm:$0xf]
  %v147 = vld [vmem:[%s1 + $0x1fc] sm:$0xf]
  %v164 = vunpack.c.l.b16 %v20
  %v165 = vunpack.c.l.b16 %v21
  %v166 = vunpack.c.l.b16 %v22
  %v167 = vunpack.c.l.b16 %v23
  %v168 = vunpack.c.l.b16 %v24
  %v169 = vunpack.c.l.b16 %v25
  %v170 = vunpack.c.l.b16 %v26
  %v171 = vunpack.c.l.b16 %v27
  %v172 = vunpack.c.l.b16 %v28
  %v173 = vunpack.c.l.b16 %v29
  %v174 = vunpack.c.l.b16 %v30
  %v175 = vunpack.c.l.b16 %v31
  %v176 = vunpack.c.l.b16 %v32
  %v177 = vunpack.c.l.b16 %v33
  %v178 = vunpack.c.l.b16 %v34
  %v179 = vunpack.c.l.b16 %v35
  %v180 = vpack.c.b16 %v165, %v164
  %v181 = vpack.c.b16 %v167, %v166
  %v182 = vpack.c.b16 %v169, %v168
  %v183 = vpack.c.b16 %v171, %v170
  %v184 = vpack.c.b16 %v173, %v172
  %v185 = vpack.c.b16 %v175, %v174
  %v186 = vpack.c.b16 %v177, %v176
  %v187 = vpack.c.b16 %v179, %v178
  %196 = vmatprep.subr.bf16.mxu0 0
  %197 = vmatpush1.bf16.msra.mxu0 %v180
  %198 = vmatprep.subr.bf16.mxu0 0
  %199 = vmatpush1.bf16.msra.mxu0 %v181
  %200 = vmatprep.subr.bf16.mxu0 0
  %201 = vmatpush1.bf16.msra.mxu0 %v182
  %202 = vmatprep.subr.bf16.mxu0 0
  %203 = vmatpush1.bf16.msra.mxu0 %v183
  %204 = vmatprep.subr.bf16.mxu0 0
  %205 = vmatpush1.bf16.msra.mxu0 %v184
  %206 = vmatprep.subr.bf16.mxu0 0
  %207 = vmatpush1.bf16.msra.mxu0 %v185
  %208 = vmatprep.subr.bf16.mxu0 0
  %209 = vmatpush1.bf16.msra.mxu0 %v186
  %210 = vmatprep.subr.bf16.mxu0 0
  %211 = vmatpush1.bf16.msra.mxu0 %v187
  %212 = vmatprep.subr.bf16.mxu0 0
  %213 = vmatpush1.bf16.msra.mxu0 0
  %214 = vmatprep.subr.bf16.mxu0 0
  %215 = vmatpush1.bf16.msra.mxu0 0
  %216 = vmatprep.subr.bf16.mxu0 0
  %217 = vmatpush1.bf16.msra.mxu0 0
  %218 = vmatprep.subr.bf16.mxu0 0
  %219 = vmatpush1.bf16.msra.mxu0 0
  %220 = vmatprep.subr.bf16.mxu0 0
  %221 = vmatpush1.bf16.msra.mxu0 0
  %222 = vmatprep.subr.bf16.mxu0 0
  %223 = vmatpush1.bf16.msra.mxu0 0
  %224 = vmatprep.subr.bf16.mxu0 0
  %225 = vmatpush1.bf16.msra.mxu0 0
  %226 = vmatprep.subr.bf16.mxu0 0
  %227 = vmatpush1.bf16.msra.mxu0 0
  %228 = vmatprep.mubr.bf16.mxu0 0
  %229 = vmatmul.mubr.bf16.gmra.mrb[0].mxu0 %v12
  %v230 = vpop.f32.mrb[0].mxu0
  %v231 = vadd.f32 0.0, %v230
  %v232 = vpop.f32.mrb[0].mxu0
  %v233 = vpop.f32.mrb[0].mxu0
  %v234 = vpop.f32.mrb[0].mxu0
  %235 = vdwg.mxu0
  %v252 = vunpack.c.l.b16 %v36
  %v253 = vunpack.c.l.b16 %v37
  %v254 = vunpack.c.l.b16 %v38
  %v255 = vunpack.c.l.b16 %v39
  %v256 = vunpack.c.l.b16 %v40
  %v257 = vunpack.c.l.b16 %v41
  %v258 = vunpack.c.l.b16 %v42
  %v259 = vunpack.c.l.b16 %v43
  %v260 = vunpack.c.l.b16 %v44
  %v261 = vunpack.c.l.b16 %v45
  %v262 = vunpack.c.l.b16 %v46
  %v263 = vunpack.c.l.b16 %v47
  %v264 = vunpack.c.l.b16 %v48
  %v265 = vunpack.c.l.b16 %v49
  %v266 = vunpack.c.l.b16 %v50
  %v267 = vunpack.c.l.b16 %v51
  %v268 = vpack.c.b16 %v253, %v252
  %v269 = vpack.c.b16 %v255, %v254
  %v270 = vpack.c.b16 %v257, %v256
  %v271 = vpack.c.b16 %v259, %v258
  %v272 = vpack.c.b16 %v261, %v260
  %v273 = vpack.c.b16 %v263, %v262
  %v274 = vpack.c.b16 %v265, %v264
  %v275 = vpack.c.b16 %v267, %v266
  %284 = vmatprep.subr.bf16.mxu0 0
  %285 = vmatpush1.bf16.msra.mxu0 %v268
  %286 = vmatprep.subr.bf16.mxu0 0
  %287 = vmatpush1.bf16.msra.mxu0 %v269
  %288 = vmatprep.subr.bf16.mxu0 0
  %289 = vmatpush1.bf16.msra.mxu0 %v270
  %290 = vmatprep.subr.bf16.mxu0 0
  %291 = vmatpush1.bf16.msra.mxu0 %v271
  %292 = vmatprep.subr.bf16.mxu0 0
  %293 = vmatpush1.bf16.msra.mxu0 %v272
  %294 = vmatprep.subr.bf16.mxu0 0
  %295 = vmatpush1.bf16.msra.mxu0 %v273
  %296 = vmatprep.subr.bf16.mxu0 0
  %297 = vmatpush1.bf16.msra.mxu0 %v274
  %298 = vmatprep.subr.bf16.mxu0 0
  %299 = vmatpush1.bf16.msra.mxu0 %v275
  %300 = vmatprep.subr.bf16.mxu0 0
  %301 = vmatpush1.bf16.msra.mxu0 0
  %302 = vmatprep.subr.bf16.mxu0 0
  %303 = vmatpush1.bf16.msra.mxu0 0
  %304 = vmatprep.subr.bf16.mxu0 0
  %305 = vmatpush1.bf16.msra.mxu0 0
  %306 = vmatprep.subr.bf16.mxu0 0
  %307 = vmatpush1.bf16.msra.mxu0 0
  %308 = vmatprep.subr.bf16.mxu0 0
  %309 = vmatpush1.bf16.msra.mxu0 0
  %310 = vmatprep.subr.bf16.mxu0 0
  %311 = vmatpush1.bf16.msra.mxu0 0
  %312 = vmatprep.subr.bf16.mxu0 0
  %313 = vmatpush1.bf16.msra.mxu0 0
  %314 = vmatprep.subr.bf16.mxu0 0
  %315 = vmatpush1.bf16.msra.mxu0 0
  %316 = vmatprep.mubr.bf16.mxu0 0
  %317 = vmatmul.mubr.bf16.gmra.mrb[0].mxu0 %v13
  %v318 = vpop.f32.mrb[0].mxu0
  %v319 = vadd.f32 0.0, %v318
  %v320 = vpop.f32.mrb[0].mxu0
  %v321 = vpop.f32.mrb[0].mxu0
  %v322 = vpop.f32.mrb[0].mxu0
  %323 = vdwg.mxu0
  %v340 = vunpack.c.l.b16 %v52
  %v341 = vunpack.c.l.b16 %v53
  %v342 = vunpack.c.l.b16 %v54
  %v343 = vunpack.c.l.b16 %v55
  %v344 = vunpack.c.l.b16 %v56
  %v345 = vunpack.c.l.b16 %v57
  %v346 = vunpack.c.l.b16 %v58
  %v347 = vunpack.c.l.b16 %v59
  %v348 = vunpack.c.l.b16 %v60
  %v349 = vunpack.c.l.b16 %v61
  %v350 = vunpack.c.l.b16 %v62
  %v351 = vunpack.c.l.b16 %v63
  %v352 = vunpack.c.l.b16 %v64
  %v353 = vunpack.c.l.b16 %v65
  %v354 = vunpack.c.l.b16 %v66
  %v355 = vunpack.c.l.b16 %v67
  %v356 = vpack.c.b16 %v341, %v340
  %v357 = vpack.c.b16 %v343, %v342
  %v358 = vpack.c.b16 %v345, %v344
  %v359 = vpack.c.b16 %v347, %v346
  %v360 = vpack.c.b16 %v349, %v348
  %v361 = vpack.c.b16 %v351, %v350
  %v362 = vpack.c.b16 %v353, %v352
  %v363 = vpack.c.b16 %v355, %v354
  %372 = vmatprep.subr.bf16.mxu0 0
  %373 = vmatpush1.bf16.msra.mxu0 %v356
  %374 = vmatprep.subr.bf16.mxu0 0
  %375 = vmatpush1.bf16.msra.mxu0 %v357
  %376 = vmatprep.subr.bf16.mxu0 0
  %377 = vmatpush1.bf16.msra.mxu0 %v358
  %378 = vmatprep.subr.bf16.mxu0 0
  %379 = vmatpush1.bf16.msra.mxu0 %v359
  %380 = vmatprep.subr.bf16.mxu0 0
  %381 = vmatpush1.bf16.msra.mxu0 %v360
  %382 = vmatprep.subr.bf16.mxu0 0
  %383 = vmatpush1.bf16.msra.mxu0 %v361
  %384 = vmatprep.subr.bf16.mxu0 0
  %385 = vmatpush1.bf16.msra.mxu0 %v362
  %386 = vmatprep.subr.bf16.mxu0 0
  %387 = vmatpush1.bf16.msra.mxu0 %v363
  %388 = vmatprep.subr.bf16.mxu0 0
  %389 = vmatpush1.bf16.msra.mxu0 0
  %390 = vmatprep.subr.bf16.mxu0 0
  %391 = vmatpush1.bf16.msra.mxu0 0
  %392 = vmatprep.subr.bf16.mxu0 0
  %393 = vmatpush1.bf16.msra.mxu0 0
  %394 = vmatprep.subr.bf16.mxu0 0
  %395 = vmatpush1.bf16.msra.mxu0 0
  %396 = vmatprep.subr.bf16.mxu0 0
  %397 = vmatpush1.bf16.msra.mxu0 0
  %398 = vmatprep.subr.bf16.mxu0 0
  %399 = vmatpush1.bf16.msra.mxu0 0
  %400 = vmatprep.subr.bf16.mxu0 0
  %401 = vmatpush1.bf16.msra.mxu0 0
  %402 = vmatprep.subr.bf16.mxu0 0
  %403 = vmatpush1.bf16.msra.mxu0 0
  %404 = vmatprep.mubr.bf16.mxu0 0
  %405 = vmatmul.mubr.bf16.gmra.mrb[0].mxu0 %v14
  %v406 = vpop.f32.mrb[0].mxu0
  %v407 = vadd.f32 0.0, %v406
  %v408 = vpop.f32.mrb[0].mxu0
  %v409 = vpop.f32.mrb[0].mxu0
  %v410 = vpop.f32.mrb[0].mxu0
  %411 = vdwg.mxu0
  %v428 = vunpack.c.l.b16 %v68
  %v429 = vunpack.c.l.b16 %v69
  %v430 = vunpack.c.l.b16 %v70
  %v431 = vunpack.c.l.b16 %v71
  %v432 = vunpack.c.l.b16 %v72
  %v433 = vunpack.c.l.b16 %v73
  %v434 = vunpack.c.l.b16 %v74
  %v435 = vunpack.c.l.b16 %v75
  %v436 = vunpack.c.l.b16 %v76
  %v437 = vunpack.c.l.b16 %v77
  %v438 = vunpack.c.l.b16 %v78
  %v439 = vunpack.c.l.b16 %v79
  %v440 = vunpack.c.l.b16 %v80
  %v441 = vunpack.c.l.b16 %v81
  %v442 = vunpack.c.l.b16 %v82
  %v443 = vunpack.c.l.b16 %v83
  %v444 = vpack.c.b16 %v429, %v428
  %v445 = vpack.c.b16 %v431, %v430
  %v446 = vpack.c.b16 %v433, %v432
  %v447 = vpack.c.b16 %v435, %v434
  %v448 = vpack.c.b16 %v437, %v436
  %v449 = vpack.c.b16 %v439, %v438
  %v450 = vpack.c.b16 %v441, %v440
  %v451 = vpack.c.b16 %v443, %v442
  %460 = vmatprep.subr.bf16.mxu0 0
  %461 = vmatpush1.bf16.msra.mxu0 %v444
  %462 = vmatprep.subr.bf16.mxu0 0
  %463 = vmatpush1.bf16.msra.mxu0 %v445
  %464 = vmatprep.subr.bf16.mxu0 0
  %465 = vmatpush1.bf16.msra.mxu0 %v446
  %466 = vmatprep.subr.bf16.mxu0 0
  %467 = vmatpush1.bf16.msra.mxu0 %v447
  %468 = vmatprep.subr.bf16.mxu0 0
  %469 = vmatpush1.bf16.msra.mxu0 %v448
  %470 = vmatprep.subr.bf16.mxu0 0
  %471 = vmatpush1.bf16.msra.mxu0 %v449
  %472 = vmatprep.subr.bf16.mxu0 0
  %473 = vmatpush1.bf16.msra.mxu0 %v450
  %474 = vmatprep.subr.bf16.mxu0 0
  %475 = vmatpush1.bf16.msra.mxu0 %v451
  %476 = vmatprep.subr.bf16.mxu0 0
  %477 = vmatpush1.bf16.msra.mxu0 0
  %478 = vmatprep.subr.bf16.mxu0 0
  %479 = vmatpush1.bf16.msra.mxu0 0
  %480 = vmatprep.subr.bf16.mxu0 0
  %481 = vmatpush1.bf16.msra.mxu0 0
  %482 = vmatprep.subr.bf16.mxu0 0
  %483 = vmatpush1.bf16.msra.mxu0 0
  %484 = vmatprep.subr.bf16.mxu0 0
  %485 = vmatpush1.bf16.msra.mxu0 0
  %486 = vmatprep.subr.bf16.mxu0 0
  %487 = vmatpush1.bf16.msra.mxu0 0
  %488 = vmatprep.subr.bf16.mxu0 0
  %489 = vmatpush1.bf16.msra.mxu0 0
  %490 = vmatprep.subr.bf16.mxu0 0
  %491 = vmatpush1.bf16.msra.mxu0 0
  %492 = vmatprep.mubr.bf16.mxu0 0
  %493 = vmatmul.mubr.bf16.gmra.mrb[0].mxu0 %v15
  %v494 = vpop.f32.mrb[0].mxu0
  %v495 = vadd.f32 0.0, %v494
  %v496 = vpop.f32.mrb[0].mxu0
  %v497 = vpop.f32.mrb[0].mxu0
  %v498 = vpop.f32.mrb[0].mxu0
  %499 = vdwg.mxu0
  %v516 = vunpack.c.l.b16 %v84
  %v517 = vunpack.c.l.b16 %v85
  %v518 = vunpack.c.l.b16 %v86
  %v519 = vunpack.c.l.b16 %v87
  %v520 = vunpack.c.l.b16 %v88
  %v521 = vunpack.c.l.b16 %v89
  %v522 = vunpack.c.l.b16 %v90
  %v523 = vunpack.c.l.b16 %v91
  %v524 = vunpack.c.l.b16 %v92
  %v525 = vunpack.c.l.b16 %v93
  %v526 = vunpack.c.l.b16 %v94
  %v527 = vunpack.c.l.b16 %v95
  %v528 = vunpack.c.l.b16 %v96
  %v529 = vunpack.c.l.b16 %v97
  %v530 = vunpack.c.l.b16 %v98
  %v531 = vunpack.c.l.b16 %v99
  %v532 = vpack.c.b16 %v517, %v516
  %v533 = vpack.c.b16 %v519, %v518
  %v534 = vpack.c.b16 %v521, %v520
  %v535 = vpack.c.b16 %v523, %v522
  %v536 = vpack.c.b16 %v525, %v524
  %v537 = vpack.c.b16 %v527, %v526
  %v538 = vpack.c.b16 %v529, %v528
  %v539 = vpack.c.b16 %v531, %v530
  %548 = vmatprep.subr.bf16.mxu0 0
  %549 = vmatpush1.bf16.msra.mxu0 %v532
  %550 = vmatprep.subr.bf16.mxu0 0
  %551 = vmatpush1.bf16.msra.mxu0 %v533
  %552 = vmatprep.subr.bf16.mxu0 0
  %553 = vmatpush1.bf16.msra.mxu0 %v534
  %554 = vmatprep.subr.bf16.mxu0 0
  %555 = vmatpush1.bf16.msra.mxu0 %v535
  %556 = vmatprep.subr.bf16.mxu0 0
  %557 = vmatpush1.bf16.msra.mxu0 %v536
  %558 = vmatprep.subr.bf16.mxu0 0
  %559 = vmatpush1.bf16.msra.mxu0 %v537
  %560 = vmatprep.subr.bf16.mxu0 0
  %561 = vmatpush1.bf16.msra.mxu0 %v538
  %562 = vmatprep.subr.bf16.mxu0 0
  %563 = vmatpush1.bf16.msra.mxu0 %v539
  %564 = vmatprep.subr.bf16.mxu0 0
  %565 = vmatpush1.bf16.msra.mxu0 0
  %566 = vmatprep.subr.bf16.mxu0 0
  %567 = vmatpush1.bf16.msra.mxu0 0
  %568 = vmatprep.subr.bf16.mxu0 0
  %569 = vmatpush1.bf16.msra.mxu0 0
  %570 = vmatprep.subr.bf16.mxu0 0
  %571 = vmatpush1.bf16.msra.mxu0 0
  %572 = vmatprep.subr.bf16.mxu0 0
  %573 = vmatpush1.bf16.msra.mxu0 0
  %574 = vmatprep.subr.bf16.mxu0 0
  %575 = vmatpush1.bf16.msra.mxu0 0
  %576 = vmatprep.subr.bf16.mxu0 0
  %577 = vmatpush1.bf16.msra.mxu0 0
  %578 = vmatprep.subr.bf16.mxu0 0
  %579 = vmatpush1.bf16.msra.mxu0 0
  %580 = vmatprep.mubr.bf16.mxu0 0
  %581 = vmatmul.mubr.bf16.gmra.mrb[0].mxu0 %v16
  %v582 = vpop.f32.mrb[0].mxu0
  %v583 = vadd.f32 0.0, %v582
  %v584 = vpop.f32.mrb[0].mxu0
  %v585 = vpop.f32.mrb[0].mxu0
  %v586 = vpop.f32.mrb[0].mxu0
  %587 = vdwg.mxu0
  %v604 = vunpack.c.l.b16 %v100
  %v605 = vunpack.c.l.b16 %v101
  %v606 = vunpack.c.l.b16 %v102
  %v607 = vunpack.c.l.b16 %v103
  %v608 = vunpack.c.l.b16 %v104
  %v609 = vunpack.c.l.b16 %v105
  %v610 = vunpack.c.l.b16 %v106
  %v611 = vunpack.c.l.b16 %v107
  %v612 = vunpack.c.l.b16 %v108
  %v613 = vunpack.c.l.b16 %v109
  %v614 = vunpack.c.l.b16 %v110
  %v615 = vunpack.c.l.b16 %v111
  %v616 = vunpack.c.l.b16 %v112
  %v617 = vunpack.c.l.b16 %v113
  %v618 = vunpack.c.l.b16 %v114
  %v619 = vunpack.c.l.b16 %v115
  %v620 = vpack.c.b16 %v605, %v604
  %v621 = vpack.c.b16 %v607, %v606
  %v622 = vpack.c.b16 %v609, %v608
  %v623 = vpack.c.b16 %v611, %v610
  %v624 = vpack.c.b16 %v613, %v612
  %v625 = vpack.c.b16 %v615, %v614
  %v626 = vpack.c.b16 %v617, %v616
  %v627 = vpack.c.b16 %v619, %v618
  %636 = vmatprep.subr.bf16.mxu0 0
  %637 = vmatpush1.bf16.msra.mxu0 %v620
  %638 = vmatprep.subr.bf16.mxu0 0
  %639 = vmatpush1.bf16.msra.mxu0 %v621
  %640 = vmatprep.subr.bf16.mxu0 0
  %641 = vmatpush1.bf16.msra.mxu0 %v622
  %642 = vmatprep.subr.bf16.mxu0 0
  %643 = vmatpush1.bf16.msra.mxu0 %v623
  %644 = vmatprep.subr.bf16.mxu0 0
  %645 = vmatpush1.bf16.msra.mxu0 %v624
  %646 = vmatprep.subr.bf16.mxu0 0
  %647 = vmatpush1.bf16.msra.mxu0 %v625
  %648 = vmatprep.subr.bf16.mxu0 0
  %649 = vmatpush1.bf16.msra.mxu0 %v626
  %650 = vmatprep.subr.bf16.mxu0 0
  %651 = vmatpush1.bf16.msra.mxu0 %v627
  %652 = vmatprep.subr.bf16.mxu0 0
  %653 = vmatpush1.bf16.msra.mxu0 0
  %654 = vmatprep.subr.bf16.mxu0 0
  %655 = vmatpush1.bf16.msra.mxu0 0
  %656 = vmatprep.subr.bf16.mxu0 0
  %657 = vmatpush1.bf16.msra.mxu0 0
  %658 = vmatprep.subr.bf16.mxu0 0
  %659 = vmatpush1.bf16.msra.mxu0 0
  %660 = vmatprep.subr.bf16.mxu0 0
  %661 = vmatpush1.bf16.msra.mxu0 0
  %662 = vmatprep.subr.bf16.mxu0 0
  %663 = vmatpush1.bf16.msra.mxu0 0
  %664 = vmatprep.subr.bf16.mxu0 0
  %665 = vmatpush1.bf16.msra.mxu0 0
  %666 = vmatprep.subr.bf16.mxu0 0
  %667 = vmatpush1.bf16.msra.mxu0 0
  %668 = vmatprep.mubr.bf16.mxu0 0
  %669 = vmatmul.mubr.bf16.gmra.mrb[0].mxu0 %v17
  %v670 = vpop.f32.mrb[0].mxu0
  %v671 = vadd.f32 0.0, %v670
  %v672 = vpop.f32.mrb[0].mxu0
  %v673 = vpop.f32.mrb[0].mxu0
  %v674 = vpop.f32.mrb[0].mxu0
  %675 = vdwg.mxu0
  %v692 = vunpack.c.l.b16 %v116
  %v693 = vunpack.c.l.b16 %v117
  %v694 = vunpack.c.l.b16 %v118
  %v695 = vunpack.c.l.b16 %v119
  %v696 = vunpack.c.l.b16 %v120
  %v697 = vunpack.c.l.b16 %v121
  %v698 = vunpack.c.l.b16 %v122
  %v699 = vunpack.c.l.b16 %v123
  %v700 = vunpack.c.l.b16 %v124
  %v701 = vunpack.c.l.b16 %v125
  %v702 = vunpack.c.l.b16 %v126
  %v703 = vunpack.c.l.b16 %v127
  %v704 = vunpack.c.l.b16 %v128
  %v705 = vunpack.c.l.b16 %v129
  %v706 = vunpack.c.l.b16 %v130
  %v707 = vunpack.c.l.b16 %v131
  %v708 = vpack.c.b16 %v693, %v692
  %v709 = vpack.c.b16 %v695, %v694
  %v710 = vpack.c.b16 %v697, %v696
  %v711 = vpack.c.b16 %v699, %v698
  %v712 = vpack.c.b16 %v701, %v700
  %v713 = vpack.c.b16 %v703, %v702
  %v714 = vpack.c.b16 %v705, %v704
  %v715 = vpack.c.b16 %v707, %v706
  %724 = vmatprep.subr.bf16.mxu0 0
  %725 = vmatpush1.bf16.msra.mxu0 %v708
  %726 = vmatprep.subr.bf16.mxu0 0
  %727 = vmatpush1.bf16.msra.mxu0 %v709
  %728 = vmatprep.subr.bf16.mxu0 0
  %729 = vmatpush1.bf16.msra.mxu0 %v710
  %730 = vmatprep.subr.bf16.mxu0 0
  %731 = vmatpush1.bf16.msra.mxu0 %v711
  %732 = vmatprep.subr.bf16.mxu0 0
  %733 = vmatpush1.bf16.msra.mxu0 %v712
  %734 = vmatprep.subr.bf16.mxu0 0
  %735 = vmatpush1.bf16.msra.mxu0 %v713
  %736 = vmatprep.subr.bf16.mxu0 0
  %737 = vmatpush1.bf16.msra.mxu0 %v714
  %738 = vmatprep.subr.bf16.mxu0 0
  %739 = vmatpush1.bf16.msra.mxu0 %v715
  %740 = vmatprep.subr.bf16.mxu0 0
  %741 = vmatpush1.bf16.msra.mxu0 0
  %742 = vmatprep.subr.bf16.mxu0 0
  %743 = vmatpush1.bf16.msra.mxu0 0
  %744 = vmatprep.subr.bf16.mxu0 0
  %745 = vmatpush1.bf16.msra.mxu0 0
  %746 = vmatprep.subr.bf16.mxu0 0
  %747 = vmatpush1.bf16.msra.mxu0 0
  %748 = vmatprep.subr.bf16.mxu0 0
  %749 = vmatpush1.bf16.msra.mxu0 0
  %750 = vmatprep.subr.bf16.mxu0 0
  %751 = vmatpush1.bf16.msra.mxu0 0
  %752 = vmatprep.subr.bf16.mxu0 0
  %753 = vmatpush1.bf16.msra.mxu0 0
  %754 = vmatprep.subr.bf16.mxu0 0
  %755 = vmatpush1.bf16.msra.mxu0 0
  %756 = vmatprep.mubr.bf16.mxu0 0
  %757 = vmatmul.mubr.bf16.gmra.mrb[0].mxu0 %v18
  %v758 = vpop.f32.mrb[0].mxu0
  %v759 = vadd.f32 0.0, %v758
  %v760 = vpop.f32.mrb[0].mxu0
  %v761 = vpop.f32.mrb[0].mxu0
  %v762 = vpop.f32.mrb[0].mxu0
  %763 = vdwg.mxu0
  %v780 = vunpack.c.l.b16 %v132
  %v781 = vunpack.c.l.b16 %v133
  %v782 = vunpack.c.l.b16 %v134
  %v783 = vunpack.c.l.b16 %v135
  %v784 = vunpack.c.l.b16 %v136
  %v785 = vunpack.c.l.b16 %v137
  %v786 = vunpack.c.l.b16 %v138
  %v787 = vunpack.c.l.b16 %v139
  %v788 = vunpack.c.l.b16 %v140
  %v789 = vunpack.c.l.b16 %v141
  %v790 = vunpack.c.l.b16 %v142
  %v791 = vunpack.c.l.b16 %v143
  %v792 = vunpack.c.l.b16 %v144
  %v793 = vunpack.c.l.b16 %v145
  %v794 = vunpack.c.l.b16 %v146
  %v795 = vunpack.c.l.b16 %v147
  %v796 = vpack.c.b16 %v781, %v780
  %v797 = vpack.c.b16 %v783, %v782
  %v798 = vpack.c.b16 %v785, %v784
  %v799 = vpack.c.b16 %v787, %v786
  %v800 = vpack.c.b16 %v789, %v788
  %v801 = vpack.c.b16 %v791, %v790
  %v802 = vpack.c.b16 %v793, %v792
  %v803 = vpack.c.b16 %v795, %v794
  %812 = vmatprep.subr.bf16.mxu0 0
  %813 = vmatpush1.bf16.msra.mxu0 %v796
  %814 = vmatprep.subr.bf16.mxu0 0
  %815 = vmatpush1.bf16.msra.mxu0 %v797
  %816 = vmatprep.subr.bf16.mxu0 0
  %817 = vmatpush1.bf16.msra.mxu0 %v798
  %818 = vmatprep.subr.bf16.mxu0 0
  %819 = vmatpush1.bf16.msra.mxu0 %v799
  %820 = vmatprep.subr.bf16.mxu0 0
  %821 = vmatpush1.bf16.msra.mxu0 %v800
  %822 = vmatprep.subr.bf16.mxu0 0
  %823 = vmatpush1.bf16.msra.mxu0 %v801
  %824 = vmatprep.subr.bf16.mxu0 0
  %825 = vmatpush1.bf16.msra.mxu0 %v802
  %826 = vmatprep.subr.bf16.mxu0 0
  %827 = vmatpush1.bf16.msra.mxu0 %v803
  %828 = vmatprep.subr.bf16.mxu0 0
  %829 = vmatpush1.bf16.msra.mxu0 0
  %830 = vmatprep.subr.bf16.mxu0 0
  %831 = vmatpush1.bf16.msra.mxu0 0
  %832 = vmatprep.subr.bf16.mxu0 0
  %833 = vmatpush1.bf16.msra.mxu0 0
  %834 = vmatprep.subr.bf16.mxu0 0
  %835 = vmatpush1.bf16.msra.mxu0 0
  %836 = vmatprep.subr.bf16.mxu0 0
  %837 = vmatpush1.bf16.msra.mxu0 0
  %838 = vmatprep.subr.bf16.mxu0 0
  %839 = vmatpush1.bf16.msra.mxu0 0
  %840 = vmatprep.subr.bf16.mxu0 0
  %841 = vmatpush1.bf16.msra.mxu0 0
  %842 = vmatprep.subr.bf16.mxu0 0
  %843 = vmatpush1.bf16.msra.mxu0 0
  %844 = vmatprep.mubr.bf16.mxu0 0
  %845 = vmatmul.mubr.bf16.gmra.mrb[0].mxu0 %v19
  %v846 = vpop.f32.mrb[0].mxu0
  %v847 = vadd.f32 0.0, %v846
  %v848 = vpop.f32.mrb[0].mxu0
  %v849 = vpop.f32.mrb[0].mxu0
  %v850 = vpop.f32.mrb[0].mxu0
  %851 = vdwg.mxu0
  %852 = vst [vmem:[%s2] sm:$0xff] %v231
  %853 = vst [vmem:[%s2 + $0x8] sm:$0xff] %v319
  %854 = vst [vmem:[%s2 + $0x10] sm:$0xff] %v407
  %855 = vst [vmem:[%s2 + $0x18] sm:$0xff] %v495
  %856 = vst [vmem:[%s2 + $0x20] sm:$0xff] %v583
  %857 = vst [vmem:[%s2 + $0x28] sm:$0xff] %v671
  %858 = vst [vmem:[%s2 + $0x30] sm:$0xff] %v759
  %859 = vst [vmem:[%s2 + $0x38] sm:$0xff] %v847
  // Predicated region
  $region10: #{spectral_conv1d.1} parent=0 // pred_check
    _
  $region11: #{spectral_conv1d.1} parent=0 // pred_check_branch
    %861 = sbr.rel (0) target = $region13
  $region12: #{spectral_conv1d.1} parent=0 // pred_region
    _
  $region13: #{spectral_conv1d.1} parent=0 // pred_fallthru
    _
  // Predicated region
  $region14: #{spectral_conv1d.1} parent=0 // pred_check
    _
  $region15: #{spectral_conv1d.1} parent=0 // pred_check_branch
    %863 = sbr.rel (0) target = $region17
  $region16: #{spectral_conv1d.1} parent=0 // pred_region
    _
  $region17: #{spectral_conv1d.1} parent=0 // pred_fallthru
    _

</llo_original>
